<compile_context>
chip_gen: v6e
topology: v6e:2x2x1
jax: 0.10.0
libtpu: 0.0.40
codegen_flags: <defaults>
</compile_context>

<pallas_src>
import functools

import numpy as np
import jax
import jax.numpy as jnp
from jax import lax
from jax.experimental import pallas as pl
from jax.experimental.pallas import tpu as pltpu

# ----------------------------- configuration --------------------------------
IN_FEATURES = 6
OUT_FEATURES = 4          # == number of qubits in the QuantumLayer
SPECTRUM_LAYERS = 2
USE_NOISE = 0
N_QUBITS = OUT_FEATURES
DIM = 2 ** N_QUBITS       # statevector dimension
D2 = 2 * DIM              # packed [Re | Im] width
BN_EPS = 1e-5
ROW_BLOCK = 64            # rows per grid step (sweep 64/128/256; vreg pressure)

# ------------------- const-slab layout (rows x 128 lanes, f32) --------------
R_W = 0                                        # [0:IN, 0:128]   W (padded to 128 lanes)
R_SG2 = 8                                      # [.., 0:D2]  [gamma*S | gamma*S]
R_BETA = R_SG2 + OUT_FEATURES                  # row, 0:D2   [beta@S  | beta@S ]
R_SGN = R_BETA + 1                             # row, 0:D2   [-1...-1 | +1...+1]
R_PSI = R_SGN + 1                              # row, 0:D2   [Re psi0 | Im psi0]
R_PSI_SW = R_PSI + 1                           # row, 0:D2   [Im psi0 | Re psi0]
R_U1 = 16                                      # (L-1) block matrices (D2, D2)
R_U1SW = R_U1 + D2 * (SPECTRUM_LAYERS - 1)     # (L-1) column-half-swapped blocks
R_U2 = R_U1SW + D2 * (SPECTRUM_LAYERS - 1)     # block matrix (D2, D2)
R_Z = R_U2 + D2                                # [.., 0:128]  vstack([Z, Z]) zero-padded
CONST_ROWS = ((R_Z + D2 + 7) // 8) * 8         # pad to sublane multiple
CONST_COLS = 128                               # lane-dense minor dim


# ------------------- quantum-circuit glue (parameter setup) -----------------
def _rot_matrix(phi, theta, omega):
    """PennyLane qml.Rot(phi, theta, omega) = RZ(omega) RY(theta) RZ(phi)."""
    c, s = np.cos(theta / 2.0), np.sin(theta / 2.0)
    return np.array(
        [[np.exp(-1j * (phi + omega) / 2) * c, -np.exp(1j * (phi - omega) / 2) * s],
         [np.exp(-1j * (phi - omega) / 2) * s, np.exp(1j * (phi + omega) / 2) * c]],
        dtype=np.complex128,
    )


def _embed_1q(g, wire, n):
    """Embed 2x2 gate on `wire` into 2^n x 2^n.  Wire 0 = most significant bit."""
    return np.kron(np.eye(2 ** wire), np.kron(g, np.eye(2 ** (n - 1 - wire))))


def _bit(k, wire, n):
    return (k >> (n - 1 - wire)) & 1


def _cz(a, b, n):
    d = np.ones(2 ** n, dtype=np.complex128)
    for k in range(2 ** n):
        if _bit(k, a, n) and _bit(k, b, n):
            d[k] = -1.0
    return np.diag(d)


def _sel_layer_unitary(w, n):
    """One StronglyEntanglingLayers layer: Rot on each wire, then ring of CZ (range=1)."""
    U = np.eye(2 ** n, dtype=np.complex128)
    for q in range(n):
        U = _embed_1q(_rot_matrix(w[q, 0], w[q, 1], w[q, 2]), q, n) @ U
    if n > 1:
        for i in range(n):
            j = (i + 1) % n
            if j != i:
                U = _cz(i, j, n) @ U
    return U


def _build_circuit_tensors(weights1, weights2, n):
    """Transposed (row-vector convention) real/imag unitaries, RZ-phase coefficient
    matrix S, and PauliZ expectation matrix Zmat (np.float32)."""
    dim = 2 ** n
    u1t_r, u1t_i = [], []
    for i in range(weights1.shape[0]):
        U = _sel_layer_unitary(weights1[i, 0], n)          # weights1[i] has shape (1, n, 3)
        Ut = U.T
        u1t_r.append(np.real(Ut))
        u1t_i.append(np.imag(Ut))
    U2 = _sel_layer_unitary(weights2[0], n)
    u2t_r, u2t_i = np.real(U2.T), np.imag(U2.T)

    # RZ(y_j) on wire j  =>  diagonal phase exp(i * sum_j 0.5*(2*bit_j(k)-1) * y_j)
    S = np.zeros((n, dim), dtype=np.float64)
    for j in range(n):
        for k in range(dim):
            S[j, k] = 0.5 * (2 * _bit(k, j, n) - 1)

    # <Z_j> = sum_k |amp_k|^2 * (+1 if bit_j(k)==0 else -1)
    Zmat = np.zeros((dim, n), dtype=np.float64)
    for k in range(dim):
        for j in range(n):
            Zmat[k, j] = 1.0 - 2.0 * _bit(k, j, n)

    f32 = lambda a: np.asarray(a, dtype=np.float32)
    return (f32(np.stack(u1t_r)), f32(np.stack(u1t_i)),
            f32(u2t_r), f32(u2t_i), f32(S), f32(Zmat))


def _pack_constants(W, gamma, beta, S, u1r, u1i, u2r, u2i, Zmat):
    """Host-side folding of all input-independent tensors into one 128-lane slab."""
    W = np.asarray(W, np.float32)
    gamma = np.asarray(gamma, np.float32).reshape(-1)
    beta = np.asarray(beta, np.float32).reshape(1, -1)

    slab = np.zeros((CONST_ROWS, CONST_COLS), dtype=np.float32)
    slab[R_W:R_W + IN_FEATURES, 0:OUT_FEATURES] = W

    Sg = gamma[:, None] * S                         # BN scale folded into phase matrix
    betaS = (beta @ S)[0]                           # BN shift folded into phase offset
    slab[R_SG2:R_SG2 + OUT_FEATURES, 0:DIM] = Sg
    slab[R_SG2:R_SG2 + OUT_FEATURES, DIM:D2] = Sg
    slab[R_BETA, 0:DIM] = betaS
    slab[R_BETA, DIM:D2] = betaS
    slab[R_SGN, 0:DIM] = -1.0
    slab[R_SGN, DIM:D2] = 1.0

    # psi0 = SEL(weights1[0]) |0..0>  ==  row 0 of U1[0]^T (row-vector convention)
    slab[R_PSI, 0:DIM] = u1r[0][0]
    slab[R_PSI, DIM:D2] = u1i[0][0]
    slab[R_PSI_SW, 0:DIM] = u1i[0][0]
    slab[R_PSI_SW, DIM:D2] = u1r[0][0]

    def blockc(ur, ui):                             # complex matmul as real block matmul
        return np.block([[ur, ui], [-ui, ur]]).astype(np.float32)

    for i in range(1, SPECTRUM_LAYERS):
        Ub = blockc(u1r[i], u1i[i])
        r = R_U1 + D2 * (i - 1)
        slab[r:r + D2, 0:D2] = Ub
        # pre-swapped columns: state @ Ub_sw == half-swap(state @ Ub)  -> no XLU roll
        rs = R_U1SW + D2 * (i - 1)
        slab[rs:rs + D2, 0:D2] = np.hstack([Ub[:, DIM:], Ub[:, :DIM]])
    slab[R_U2:R_U2 + D2, 0:D2] = blockc(u2r, u2i)
    # Z readout padded to 128 lanes (columns >= OUT are zero) -> lane-dense output dot
    slab[R_Z:R_Z + D2, 0:OUT_FEATURES] = np.vstack([Zmat, Zmat])
    return jnp.asarray(slab)


# --------------------------- Pallas kernels -----------------------------------
def stats_kernel(x_ref, c_ref, dyn_ref, acc_ref, *, row_block, true_batch):
    """Pass 1: batch sum / sumsq reduction over row blocks -> mean, inv_std."""
    i = pl.program_id(0)

    @pl.when(i == 0)
    def _():
        acc_ref[...] = jnp.zeros_like(acc_ref)

    x = x_ref[...]                                              # (R, IN)
    Wf = c_ref[R_W:R_W + IN_FEATURES, :]                        # (IN, 128), lanes>=OUT zero
    y = jnp.dot(x, Wf, preferred_element_type=jnp.float32)      # (R, 128)

    # mask padded batch rows (batch may not divide the row block)
    row_ids = i * row_block + lax.broadcasted_iota(jnp.int32, (row_block, 1), 0)
    mask = (row_ids < true_batch).astype(jnp.float32)           # (R, 1)
    ym = y * mask
    acc_ref[0:1, :] += jnp.sum(ym, axis=0, keepdims=True)
    acc_ref[1:2, :] += jnp.sum(ym * ym, axis=0, keepdims=True)

    @pl.when(i == pl.num_programs(0) - 1)
    def _():
        inv_n = 1.0 / float(true_batch)
        mean = acc_ref[0:1, :] * inv_n
        var = acc_ref[1:2, :] * inv_n - mean * mean             # biased var (BN training)
        inv_std = lax.rsqrt(var + BN_EPS)
        dyn_ref[...] = jnp.zeros_like(dyn_ref)
        dyn_ref[0:1, :] = mean
        dyn_ref[1:2, :] = inv_std


def hybrid_kernel(x_ref, c_ref, dyn_ref, out_ref):
    """Pass 2: per row-block Linear -> BN normalize -> quantum circuit -> <Z_j>."""
    x = x_ref[...]                                              # (R, IN)

    # ---- nn.Linear (bias dropped: cancelled exactly by batch-stat BN) ----
    W = c_ref[R_W:R_W + IN_FEATURES, 0:OUT_FEATURES]            # (IN, OUT)
    y = jnp.dot(x, W, preferred_element_type=jnp.float32)       # (R, OUT)

    # ---- BatchNorm1d normalize with precomputed batch stats (affine folded) ----
    mean = dyn_ref[0:1, 0:OUT_FEATURES]
    invs = dyn_ref[1:2, 0:OUT_FEATURES]
    z = (y - mean) * invs                                       # (R, OUT)

    # ---- RZ(input) phase coefficients for the packed [Re|Im] state ----
    Sg2 = c_ref[R_SG2:R_SG2 + OUT_FEATURES, 0:D2]               # (OUT, 2D)
    betaS2 = c_ref[R_BETA:R_BETA + 1, 0:D2]                     # (1, 2D)
    sgn = c_ref[R_SGN:R_SGN + 1, 0:D2]                          # (1, 2D)
    ang = jnp.dot(z, Sg2, preferred_element_type=jnp.float32) + betaS2
    dcc = jnp.cos(ang)                                          # [ cos | cos ]
    dss = jnp.sin(ang) * sgn                                    # [-sin | sin ]

    # ---- state after SEL(weights1[0]) (precomputed psi0) and first RZ layer ----
    psi0 = c_ref[R_PSI:R_PSI + 1, 0:D2]                         # [Re | Im]
    psi0_sw = c_ref[R_PSI_SW:R_PSI_SW + 1, 0:D2]                # [Im | Re]
    state = psi0 * dcc + psi0_sw * dss                          # (R, 2D)

    # ---- remaining spectrum layers: block-complex SEL matmul + RZ phase ----
    # swapped halves obtained via pre-swapped block matrix (no cross-lane roll)
    for i in range(1, SPECTRUM_LAYERS):          # static, small, fixed
        r0 = R_U1 + D2 * (i - 1)
        r1 = R_U1SW + D2 * (i - 1)
        u1b = c_ref[r0:r0 + D2, 0:D2]
        u1b_sw = c_ref[r1:r1 + D2, 0:D2]
        new = jnp.dot(state, u1b, preferred_element_type=jnp.float32)
        swp = jnp.dot(state, u1b_sw, preferred_element_type=jnp.float32)
        state = new * dcc + swp * dss

    # ---- final SEL(weights2) ----
    u2b = c_ref[R_U2:R_U2 + D2, 0:D2]
    state = jnp.dot(state, u2b, preferred_element_type=jnp.float32)

    # ---- PauliZ expectations: |amp|^2 @ Z (Z padded to 128 lanes -> dense store) ----
    zfull = c_ref[R_Z:R_Z + D2, :]                              # (2D, 128)
    out_ref[...] = jnp.dot(state * state, zfull,
                           preferred_element_type=jnp.float32)


# ------------------------------- wrapper --------------------------------------
def hybrid_layer_forward(x, const_slab, *, row_block=ROW_BLOCK):
    B = x.shape[0]
    rb = min(row_block, ((B + 7) // 8) * 8)
    rb = max(8, (rb // 8) * 8)
    B_pad = ((B + rb - 1) // rb) * rb
    x_p = jnp.pad(x, ((0, B_pad - B), (0, 0))) if B_pad != B else x
    nb = B_pad // rb

    x_spec = pl.BlockSpec((rb, IN_FEATURES), lambda i: (i, 0))
    slab_spec = pl.BlockSpec((CONST_ROWS, CONST_COLS), lambda i: (0, 0))   # resident
    dyn_spec = pl.BlockSpec((8, 128), lambda i: (0, 0))                    # resident

    # ---- Pass 1: batch statistics (reduction over row blocks) ----
    dyn = pl.pallas_call(
        functools.partial(stats_kernel, row_block=rb, true_batch=B),
        out_shape=jax.ShapeDtypeStruct((8, 128), jnp.float32),
        grid=(nb,),
        in_specs=[x_spec, slab_spec],
        out_specs=dyn_spec,
        scratch_shapes=[pltpu.VMEM((2, 128), jnp.float32)],
        compiler_params=pltpu.CompilerParams(dimension_semantics=("arbitrary",)),
    )(x_p, const_slab)

    # ---- Pass 2: main compute, parallel over row blocks (v7x dual-TC) ----
    flops_per_row = (2 * IN_FEATURES * OUT_FEATURES
                     + 2 * OUT_FEATURES * D2
                     + (SPECTRUM_LAYERS - 1) * 4 * D2 * D2
                     + 2 * D2 * D2
                     + 2 * D2 * CONST_COLS)
    cost = pl.CostEstimate(
        flops=int(B_pad * flops_per_row),
        transcendentals=int(2 * B_pad * D2),
        bytes_accessed=int(4 * (x_p.size + const_slab.size + 8 * 128
                                + B_pad * CONST_COLS)))

    out = pl.pallas_call(
        hybrid_kernel,
        out_shape=jax.ShapeDtypeStruct((B_pad, CONST_COLS), jnp.float32),
        grid=(nb,),
        in_specs=[x_spec, slab_spec, dyn_spec],
        out_specs=pl.BlockSpec((rb, CONST_COLS), lambda i: (i, 0)),
        compiler_params=pltpu.CompilerParams(dimension_semantics=("parallel",)),
        cost_estimate=cost,
    )(x_p, const_slab, dyn)

    return out[:B, :OUT_FEATURES]


# --------------------------- pure-JAX reference -------------------------------
def hybrid_layer_reference(x, W, b, gamma, beta, S, u1r, u1i, u2r, u2i, Zmat):
    y = x @ W + b
    mean = jnp.mean(y, axis=0, keepdims=True)
    var = jnp.mean((y - mean) ** 2, axis=0, keepdims=True)        # biased (BN training)
    y = gamma * (y - mean) / jnp.sqrt(var + BN_EPS) + beta

    ang = y @ S
    dc, dsn = jnp.cos(ang), jnp.sin(ang)
    B = x.shape[0]
    sr = jnp.zeros((B, DIM), jnp.float32).at[:, 0].set(1.0)
    si = jnp.zeros((B, DIM), jnp.float32)
    for i in range(SPECTRUM_LAYERS):
        sr, si = sr @ u1r[i] - si @ u1i[i], sr @ u1i[i] + si @ u1r[i]
        sr, si = sr * dc - si * dsn, sr * dsn + si * dc
    sr, si = sr @ u2r - si @ u2i, sr @ u2i + si @ u2r
    return (sr * sr + si * si) @ Zmat


# ----------------------------------- main -------------------------------------
if __name__ == "__main__":
    key = jax.random.PRNGKey(0)
    k_x, k_x2, k_w, k_b, k_g, k_be, k_q1, k_q2 = jax.random.split(key, 8)

    # example inputs: a tiny batch (single block) and a larger batch that
    # exercises the row-block grid + batch padding/masking path.
    x_small = jax.random.normal(k_x, (8, IN_FEATURES), dtype=jnp.float32)
    x_large = jax.random.normal(k_x2, (200, IN_FEATURES), dtype=jnp.float32)

    # deterministic parameter init (non-trivial gamma/beta to exercise the BN fold)
    W = jax.random.normal(k_w, (IN_FEATURES, OUT_FEATURES), dtype=jnp.float32) * 0.3
    b = jax.random.normal(k_b, (1, OUT_FEATURES), dtype=jnp.float32) * 0.1
    gamma = 1.0 + 0.1 * jax.random.normal(k_g, (1, OUT_FEATURES), dtype=jnp.float32)
    beta = 0.1 * jax.random.normal(k_be, (1, OUT_FEATURES), dtype=jnp.float32)

    weights1 = np.asarray(
        jax.random.uniform(k_q1, (SPECTRUM_LAYERS, 1, N_QUBITS, 3),
                           minval=0.0, maxval=2 * np.pi), dtype=np.float64)
    weights2 = np.asarray(
        jax.random.uniform(k_q2, (1, N_QUBITS, 3),
                           minval=0.0, maxval=2 * np.pi), dtype=np.float64)

    u1r, u1i, u2r, u2i, S, Zmat = _build_circuit_tensors(weights1, weights2, N_QUBITS)
    const_slab = _pack_constants(W, gamma, beta, S, u1r, u1i, u2r, u2i, Zmat)

    for x in (x_small, x_large):
        out = hybrid_layer_forward(x, const_slab)
        out = jax.block_until_ready(out)
        ref = hybrid_layer_reference(x, W, b, gamma, beta, S, u1r, u1i, u2r, u2i, Zmat)
        np.testing.assert_allclose(np.asarray(out), np.asarray(ref), rtol=1e-4, atol=1e-4)
        assert np.all(np.abs(np.asarray(out)) <= 1.0 + 1e-4)   # expvals of PauliZ

    print("KERNEL_OK")
</pallas_src>

<mosaic_0001>
module attributes {stable_mosaic.version = 11 : i64} {
  func.func @stats_kernel(%arg0: i32, %arg1: memref<8x6xf32, #tpu.memory_space<vmem>>, %arg2: memref<144x128xf32, #tpu.memory_space<vmem>>, %arg3: memref<8x128xf32, #tpu.memory_space<vmem>>, %arg4: memref<2x128xf32, #tpu.memory_space<vmem>>) attributes {dimension_semantics = [#tpu.dimension_semantics<arbitrary>], iteration_bounds = array<i64: 1>, scalar_prefetch = 0 : i64, scratch_operands = 1 : i64, tpu.core_type = #tpu.core_type<tc>, window_params = [{transform_indices = @transform_0, window_bounds = array<i64: 8, 6>}, {pipeline_mode = #tpu.pipeline_mode<synchronous>, transform_indices = @transform_1, window_bounds = array<i64: 144, 128>}, {pipeline_mode = #tpu.pipeline_mode<synchronous>, transform_indices = @transform_2, window_bounds = array<i64: 8, 128>}]} {
    %c0_i32 = arith.constant 0 : i32
    %0 = arith.cmpi eq, %arg0, %c0_i32 : i32
    %1 = arith.extui %0 : i1 to i32
    %c0_i32_0 = arith.constant 0 : i32
    %2 = arith.cmpi ne, %1, %c0_i32_0 : i32
    scf.if %2 {
      %cst_16 = arith.constant 0.000000e+00 : f32
      %30 = vector.broadcast %cst_16 : f32 to vector<2x128xf32>
      %c0_17 = arith.constant 0 : index
      %c0_18 = arith.constant 0 : index
      %31 = vector.load %arg4[%c0_17, %c0_18] : memref<2x128xf32, #tpu.memory_space<vmem>>, vector<2x128xf32>
      tpu.vector_store %arg4[%c0_17, %c0_18], %30 {strides = array<i32>} : memref<2x128xf32, #tpu.memory_space<vmem>>, vector<2x128xf32>,
    } else {
    }
    %c0 = arith.constant 0 : index
    %c0_1 = arith.constant 0 : index
    %3 = vector.load %arg1[%c0, %c0_1] : memref<8x6xf32, #tpu.memory_space<vmem>>, vector<8x6xf32>
    %c0_2 = arith.constant 0 : index
    %c0_3 = arith.constant 0 : index
    %4 = vector.load %arg2[%c0_2, %c0_3] : memref<144x128xf32, #tpu.memory_space<vmem>>, vector<6x128xf32>
    %cst = arith.constant dense<0.000000e+00> : vector<8x128xf32>
    %5 = tpu.matmul %3, %4, %cst {dimension_numbers = #tpu.dot_dimension_numbers<[1], [0], [0], [1], [0, 0, 1, 1], [], []>} : vector<8x6xf32>, vector<6x128xf32>, vector<8x128xf32> -> vector<8x128xf32>
    %c8_i32 = arith.constant 8 : i32
    %6 = arith.muli %arg0, %c8_i32 : i32
    %7 = tpu.iota {dimensions = array<i32: 0>} : vector<8x1xi32>
    %8 = vector.broadcast %6 : i32 to vector<8x1xi32>
    %9 = arith.addi %8, %7 : vector<8x1xi32>
    %c8_i32_4 = arith.constant 8 : i32
    %10 = vector.broadcast %c8_i32_4 : i32 to vector<8x1xi32>
    %11 = arith.cmpi slt, %9, %10 : vector<8x1xi32>
    %12 = arith.extui %11 : vector<8x1xi1> to vector<8x1xi32>
    %13 = arith.sitofp %12 : vector<8x1xi32> to vector<8x1xf32>
    %14 = vector.broadcast %13 : vector<8x1xf32> to vector<8x128xf32>
    %15 = arith.mulf %5, %14 : vector<8x128xf32>
    %c0_5 = arith.constant 0 : index
    %c0_6 = arith.constant 0 : index
    %16 = vector.load %arg4[%c0_5, %c0_6] : memref<2x128xf32, #tpu.memory_space<vmem>>, vector<1x128xf32>
    %cst_7 = arith.constant dense<0.000000e+00> : vector<128xf32>
    %17 = vector.multi_reduction <add>, %15, %cst_7 [0] : vector<8x128xf32> to vector<128xf32>
    %18 = vector.shape_cast %17 : vector<128xf32> to vector<1x128xf32>
    %19 = arith.addf %16, %18 : vector<1x128xf32>
    %c0_8 = arith.constant 0 : index
    %c0_9 = arith.constant 0 : index
    %20 = vector.load %arg4[%c0_8, %c0_9] : memref<2x128xf32, #tpu.memory_space<vmem>>, vector<1x128xf32>
    tpu.vector_store %arg4[%c0_8, %c0_9], %19 {strides = array<i32>} : memref<2x128xf32, #tpu.memory_space<vmem>>, vector<1x128xf32>,
    %c1 = arith.constant 1 : index
    %c0_10 = arith.constant 0 : index
    %21 = vector.load %arg4[%c1, %c0_10] : memref<2x128xf32, #tpu.memory_space<vmem>>, vector<1x128xf32>
    %22 = arith.mulf %15, %15 : vector<8x128xf32>
    %cst_11 = arith.constant dense<0.000000e+00> : vector<128xf32>
    %23 = vector.multi_reduction <add>, %22, %cst_11 [0] : vector<8x128xf32> to vector<128xf32>
    %24 = vector.shape_cast %23 : vector<128xf32> to vector<1x128xf32>
    %25 = arith.addf %21, %24 : vector<1x128xf32>
    %c1_12 = arith.constant 1 : index
    %c0_13 = arith.constant 0 : index
    %26 = vector.load %arg4[%c1_12, %c0_13] : memref<2x128xf32, #tpu.memory_space<vmem>>, vector<1x128xf32>
    tpu.vector_store %arg4[%c1_12, %c0_13], %25 {strides = array<i32>} : memref<2x128xf32, #tpu.memory_space<vmem>>, vector<1x128xf32>,
    %c0_i32_14 = arith.constant 0 : i32
    %27 = arith.cmpi eq, %arg0, %c0_i32_14 : i32
    %28 = arith.extui %27 : i1 to i32
    %c0_i32_15 = arith.constant 0 : i32
    %29 = arith.cmpi ne, %28, %c0_i32_15 : i32
    scf.if %29 {
      %c0_16 = arith.constant 0 : index
      %c0_17 = arith.constant 0 : index
      %30 = vector.load %arg4[%c0_16, %c0_17] : memref<2x128xf32, #tpu.memory_space<vmem>>, vector<1x128xf32>
      %cst_18 = arith.constant 1.250000e-01 : f32
      %31 = vector.broadcast %cst_18 : f32 to vector<1x128xf32>
      %32 = arith.mulf %30, %31 : vector<1x128xf32>
      %c1_19 = arith.constant 1 : index
      %c0_20 = arith.constant 0 : index
      %33 = vector.load %arg4[%c1_19, %c0_20] : memref<2x128xf32, #tpu.memory_space<vmem>>, vector<1x128xf32>
      %cst_21 = arith.constant 1.250000e-01 : f32
      %34 = vector.broadcast %cst_21 : f32 to vector<1x128xf32>
      %35 = arith.mulf %33, %34 : vector<1x128xf32>
      %36 = arith.mulf %32, %32 : vector<1x128xf32>
      %37 = arith.subf %35, %36 : vector<1x128xf32>
      %cst_22 = arith.constant 9.99999974E-6 : f32
      %38 = vector.broadcast %cst_22 : f32 to vector<1x128xf32>
      %39 = arith.addf %37, %38 : vector<1x128xf32>
      %40 = math.rsqrt %39 : vector<1x128xf32>
      %cst_23 = arith.constant 0.000000e+00 : f32
      %41 = vector.broadcast %cst_23 : f32 to vector<8x128xf32>
      %c0_24 = arith.constant 0 : index
      %c0_25 = arith.constant 0 : index
      %42 = vector.load %arg3[%c0_24, %c0_25] : memref<8x128xf32, #tpu.memory_space<vmem>>, vector<8x128xf32>
      tpu.vector_store %arg3[%c0_24, %c0_25], %41 {strides = array<i32>} : memref<8x128xf32, #tpu.memory_space<vmem>>, vector<8x128xf32>,
      %c0_26 = arith.constant 0 : index
      %c0_27 = arith.constant 0 : index
      %43 = vector.load %arg3[%c0_26, %c0_27] : memref<8x128xf32, #tpu.memory_space<vmem>>, vector<1x128xf32>
      tpu.vector_store %arg3[%c0_26, %c0_27], %32 {strides = array<i32>} : memref<8x128xf32, #tpu.memory_space<vmem>>, vector<1x128xf32>,
      %c1_28 = arith.constant 1 : index
      %c0_29 = arith.constant 0 : index
      %44 = vector.load %arg3[%c1_28, %c0_29] : memref<8x128xf32, #tpu.memory_space<vmem>>, vector<1x128xf32>
      tpu.vector_store %arg3[%c1_28, %c0_29], %40 {strides = array<i32>} : memref<8x128xf32, #tpu.memory_space<vmem>>, vector<1x128xf32>,
    } else {
    }
    return
  }
  func.func @transform_0(%arg0: i32) -> (i32, i32) {
    %c0_i32 = arith.constant 0 : i32
    %c0_i32_0 = arith.constant 0 : i32
    return %arg0, %c0_i32 : i32, i32
  }
  func.func @transform_1(%arg0: i32) -> (i32, i32) {
    %c0_i32 = arith.constant 0 : i32
    %c0_i32_0 = arith.constant 0 : i32
    %c0_i32_1 = arith.constant 0 : i32
    return %c0_i32, %c0_i32_0 : i32, i32
  }
  func.func @transform_2(%arg0: i32) -> (i32, i32) {
    %c0_i32 = arith.constant 0 : i32
    %c0_i32_0 = arith.constant 0 : i32
    %c0_i32_1 = arith.constant 0 : i32
    return %c0_i32, %c0_i32_0 : i32, i32
  }
}

</mosaic_0001>

<llo_original>
// kernel: tpu_custom_call.1
$region0: #{tpu_custom_call.1}
  #allocation0 [shape = 'u32[]', space=smem, size = 0x4, offset = 0x4, fixed_abs, tag = 'smem constant byte address 0x4 - core index']
  #allocation1 [shape = 'u32[144,128]{1,0:T(1,128)}', space=vmem, size = 0x12000, scoped, tag = 'internal scratch']
  #allocation2 [shape = 'f32[2,128]{1,0:T(2,128)}', space=vmem, size = 0x400, scoped, tag = 'scratch operand']
  %s0 = inlined_call_operand.hbm [shape: f32[8,6], index: 0, kind: input, shape index: {}]
  %s1 = inlined_call_operand.hbm [shape: f32[144,128], index: 1, kind: input, shape index: {}]
  %s2 = inlined_call_operand.hbm [shape: f32[8,128], index: 2, kind: output, shape index: {}]
  %s3 = sld [smem:[#allocation0]]
  $region34: #{tpu_custom_call.1} parent=0
    _
  %s5 = ssub.s32 1, %s3
  %s6 = scalar_select 0, %s5, %s3
  $region1: #{tpu_custom_call.1} parent=0
    #allocation3 [shape = 'u8[4096]{0}', space=vmem, size = 0x1000, scoped, tag = 'input window, operand 0, single buffered']
    #allocation4 [shape = 's32[1]{0}', space=sflag, size = 0x4, scoped, tag = 'scoped memory for tpu_custom_call.1']
    #allocation5 [shape = 's32[1]{0}', space=sflag, size = 0x4, scoped, tag = 'scoped memory for tpu_custom_call.1']
    #allocation6 [shape = 'u8[73728]{0}', space=vmem, size = 0x12000, scoped, tag = 'input window, operand 1, single buffered']
    #allocation7 [shape = 's32[1]{0}', space=sflag, size = 0x4, scoped, tag = 'scoped memory for tpu_custom_call.1']
    #allocation8 [shape = 'u8[4096]{0}', space=vmem, size = 0x1000, scoped, tag = 'output window, operand 0, single buffered']
    %7 = vsyncpa [#allocation4], 0
    %8 = vsyncpa [#allocation7], 0
    %9 = vsyncpa [#allocation5], 0
    // Predicated region
    $region2: #{tpu_custom_call.1} parent=1 // pred_check
      _
    $region3: #{tpu_custom_call.1} parent=1 // pred_check_branch
      %11 = sbr.rel (0) target = $region5
    $region4: #{tpu_custom_call.1} parent=1 // pred_region
      %s13 = ssub.s32 128, 128
      %14 = vsyncadd [#allocation4], %s13
      %s16 = sshll.u32 [#allocation3], 4
      %s17 = int_to_ptr.vmem [resolvable:$true] %s16
      %19 = dma.hbm_to_vmem [thread:$0]  %s0, 128, %s17, [#allocation4]
    $region5: #{tpu_custom_call.1} parent=1 // pred_fallthru
      _
    // Predicated region
    $region6: #{tpu_custom_call.1} parent=1 // pred_check
      _
    $region7: #{tpu_custom_call.1} parent=1 // pred_check_branch
      %21 = sbr.rel (0) target = $region9
    $region8: #{tpu_custom_call.1} parent=1 // pred_region
      %s23 = ssub.s32 2304, 2304
      %24 = vsyncadd [#allocation7], %s23
      %s25 = sshll.u32 [#allocation6], 4
      %s26 = int_to_ptr.vmem [resolvable:$true] %s25
      %31 = dma.hbm_to_vmem [thread:$0]  %s1, 2304, %s26, [#allocation7], 128, 128, 8
    $region9: #{tpu_custom_call.1} parent=1 // pred_fallthru
      _
    // Predicated region
    $region10: #{tpu_custom_call.1} parent=1 // pred_check
      _
    $region11: #{tpu_custom_call.1} parent=1 // pred_check_branch
      %33 = sbr.rel (0) target = $region13
    $region12: #{tpu_custom_call.1} parent=1 // pred_region
      %34 = dma.done [#allocation4], 128
    $region13: #{tpu_custom_call.1} parent=1 // pred_fallthru
      _
    // Predicated region
    $region14: #{tpu_custom_call.1} parent=1 // pred_check
      _
    $region15: #{tpu_custom_call.1} parent=1 // pred_check_branch
      %36 = sbr.rel (0) target = $region17
    $region16: #{tpu_custom_call.1} parent=1 // pred_region
      %37 = dma.done [#allocation7], 2304
    $region17: #{tpu_custom_call.1} parent=1 // pred_fallthru
      _
    %p38 = scmp.eq.s32.totalorder 0, 0
    // Predicated region
    $region18: #{tpu_custom_call.1} parent=1 // pred_check
      %p39 = pneg %p38
    $region19: #{tpu_custom_call.1} parent=1 // pred_check_branch
      %41 = sbr.rel (%p39) target = $region21
    $region20: #{tpu_custom_call.1} parent=1 // pred_region
      %42 = vst [vmem:[#allocation2] sm:$0x3] 0.0
    $region21: #{tpu_custom_call.1} parent=1 // pred_fallthru
      _
    %v43 = vld [vmem:[#allocation3] sm:$0xff]
    %v44 = vld [vmem:[#allocation6] sm:$0x3f]
    %vm45 = vcmask 48128
    %v47 = vsel %vm45, %v43, 0
    %vm49 = vcmask 1045504
    %v51 = vsel %vm49, %v44, 0
    %53 = vmatprep.subr.mxu0 0.0
    %54 = vmatpush1.msra.mxu0 0.0
    %55 = vmatprep.subr.mxu0 0.0
    %56 = vmatpush1.msra.mxu0 0.0
    %57 = vmatprep.subr.mxu0 0.0
    %58 = vmatpush1.msra.mxu0 0.0
    %59 = vmatprep.subr.mxu0 0.0
    %60 = vmatpush1.msra.mxu0 0.0
    %61 = vmatprep.subr.mxu0 0.0
    %62 = vmatpush1.msra.mxu0 0.0
    %63 = vmatprep.subr.mxu0 0.0
    %64 = vmatpush1.msra.mxu0 0.0
    %65 = vmatprep.subr.mxu0 0.0
    %66 = vmatpush1.msra.mxu0 0.0
    %67 = vmatprep.subr.mxu0 0.0
    %68 = vmatpush1.msra.mxu0 0.0
    %69 = vmatprep.subr.mxu0 0.0
    %70 = vmatpush1.msra.mxu0 0.0
    %71 = vmatprep.subr.mxu0 0.0
    %72 = vmatpush1.msra.mxu0 0.0
    %73 = vmatprep.subr.mxu0 0.0
    %74 = vmatpush1.msra.mxu0 0.0
    %75 = vmatprep.subr.mxu0 0.0
    %76 = vmatpush1.msra.mxu0 0.0
    %77 = vmatprep.subr.mxu0 0.0
    %78 = vmatpush1.msra.mxu0 0.0
    %79 = vmatprep.subr.mxu0 0.0
    %80 = vmatpush1.msra.mxu0 0.0
    %81 = vmatprep.subr.mxu0 0.0
    %82 = vmatpush1.msra.mxu0 0.0
    %83 = vmatprep.subr.mxu0 0.0
    %84 = vmatpush1.msra.mxu0 %v51
    %85 = vmatprep.subr.mxu0 0.0
    %86 = vmatpush2.msra.mxu0 0.0
    %87 = vmatprep.subr.mxu0 0.0
    %88 = vmatpush2.msra.mxu0 0.0
    %89 = vmatprep.subr.mxu0 0.0
    %90 = vmatpush2.msra.mxu0 0.0
    %91 = vmatprep.subr.mxu0 0.0
    %92 = vmatpush2.msra.mxu0 0.0
    %93 = vmatprep.subr.mxu0 0.0
    %94 = vmatpush2.msra.mxu0 0.0
    %95 = vmatprep.subr.mxu0 0.0
    %96 = vmatpush2.msra.mxu0 0.0
    %97 = vmatprep.subr.mxu0 0.0
    %98 = vmatpush2.msra.mxu0 0.0
    %99 = vmatprep.subr.mxu0 0.0
    %100 = vmatpush2.msra.mxu0 0.0
    %101 = vmatprep.subr.mxu0 0.0
    %102 = vmatpush2.msra.mxu0 0.0
    %103 = vmatprep.subr.mxu0 0.0
    %104 = vmatpush2.msra.mxu0 0.0
    %105 = vmatprep.subr.mxu0 0.0
    %106 = vmatpush2.msra.mxu0 0.0
    %107 = vmatprep.subr.mxu0 0.0
    %108 = vmatpush2.msra.mxu0 0.0
    %109 = vmatprep.subr.mxu0 0.0
    %110 = vmatpush2.msra.mxu0 0.0
    %111 = vmatprep.subr.mxu0 0.0
    %112 = vmatpush2.msra.mxu0 0.0
    %113 = vmatprep.subr.mxu0 0.0
    %114 = vmatpush2.msra.mxu0 0.0
    %115 = vmatprep.subr.mxu0 0.0
    %116 = vmatpush2.msra.mxu0 0.0
    %117 = vmatprep.mubr.f32.mxu0 0.0
    %118 = vmatmul.mubr.f32.gmra.mxu0 %v47
    %v119 = vpop.f32.mrf.mxu0
    %v120 = vadd.f32 0.0, %v119
    %v121 = vpop.f32.mrf.mxu0
    %122 = vdwg.mxu0
    %s123 = smul.u32 0, 8
    %v124 = vlaneseq
    %v125 = vshrl.u32 %v124, 7
    %v126 = vstv %s123
    %v127 = vadd.s32 %v126, %v125
    %vm128 = vcmp.lt.s32.totalorder %v127, 8
    %v129 = vsel %vm128, 1, 0
    %v130 = vcvt.s32.f32 %v129
    %v131 = vmul.f32 %v120, %v130
    %v132 = vld [vmem:[#allocation2] sm:$0x1]
    %v133 = vrot.slane %v131, 4
    %v134 = vadd.f32 %v131, %v133
    %v135 = vrot.slane %v134, 2
    %v136 = vadd.f32 %v134, %v135
    %v137 = vrot.slane %v136, 1
    %v138 = vadd.f32 %v136, %v137
    %v139 = vadd.f32 %v132, %v138
    %140 = vst [vmem:[#allocation2] sm:$0x1] %v139
    %v141 = vld [vmem:[#allocation2 + $0x1] sm:$0x1]
    %v142 = vmul.f32 %v131, %v131
    %v143 = vrot.slane %v142, 4
    %v144 = vadd.f32 %v142, %v143
    %v145 = vrot.slane %v144, 2
    %v146 = vadd.f32 %v144, %v145
    %v147 = vrot.slane %v146, 1
    %v148 = vadd.f32 %v146, %v147
    %v149 = vadd.f32 %v141, %v148
    %150 = vst [vmem:[#allocation2 + $0x1] sm:$0x1] %v149
    // Predicated region
    $region22: #{tpu_custom_call.1} parent=1 // pred_check
      %p151 = pneg %p38
    $region23: #{tpu_custom_call.1} parent=1 // pred_check_branch
      %153 = sbr.rel (%p151) target = $region25
    $region24: #{tpu_custom_call.1} parent=1 // pred_region
      %v154 = vld [vmem:[#allocation2] sm:$0x1]
      %v155 = vmul.f32 %v154, 0.125
      %v156 = vld [vmem:[#allocation2 + $0x1] sm:$0x1]
      %v157 = vmul.f32 %v156, 0.125
      %v158 = vmul.f32 %v155, %v155
      %v159 = vsub.f32 %v157, %v158
      %v160 = vadd.f32 %v159, 1e-05
      %v161 = vrsqrt.pop %v160
      %162 = vst [vmem:[#allocation8] sm:$0xff] 0.0
      %163 = vst [vmem:[#allocation8] sm:$0x1] %v155
      %164 = vst [vmem:[#allocation8 + $0x1] sm:$0x1] %v161
    $region25: #{tpu_custom_call.1} parent=1 // pred_fallthru
      _
    // Predicated region
    $region26: #{tpu_custom_call.1} parent=1 // pred_check
      _
    $region27: #{tpu_custom_call.1} parent=1 // pred_check_branch
      %166 = sbr.rel (0) target = $region29
    $region28: #{tpu_custom_call.1} parent=1 // pred_region
      %s168 = ssub.s32 128, 128
      %169 = vsyncadd [#allocation5], %s168
      %s171 = sshll.u32 [#allocation8], 4
      %s172 = int_to_ptr.vmem [resolvable:$true] %s171
      %174 = dma.vmem_to_hbm [thread:$0]  %s172, 128, %s2, [#allocation5]
    $region29: #{tpu_custom_call.1} parent=1 // pred_fallthru
      _
    // Predicated region
    $region30: #{tpu_custom_call.1} parent=1 // pred_check
      _
    $region31: #{tpu_custom_call.1} parent=1 // pred_check_branch
      %176 = sbr.rel (0) target = $region33
    $region32: #{tpu_custom_call.1} parent=1 // pred_region
      %177 = dma.done [#allocation5], 128
    $region33: #{tpu_custom_call.1} parent=1 // pred_fallthru
      _
    %178 = vsyncpa [#allocation4], 1
    %179 = vsyncpa [#allocation7], 1
    %180 = vsyncpa [#allocation5], 1

</llo_original>
